<compile_context>
chip_gen: v7x
topology: tpu7x:2x2x1
jax: 0.10.0
libtpu: 0.0.40
codegen_flags: <defaults>
</compile_context>

<pallas_src>
import jax
import jax.numpy as jnp
from jax import lax
from jax.experimental import pallas as pl
from jax.experimental.pallas import tpu as pltpu

# Small shapes consistent with the module's forward (hidden_size -> num_classes head).
VOCAB = 64
SEQ = 8
HIDDEN = 32
NUM_HEADS = 2
HEAD_DIM = HIDDEN // NUM_HEADS          # 16
FFN = 4 * HIDDEN                        # 128
NUM_CLASSES = 2
BATCH = 2
BS = BATCH * SEQ                        # 16
LANE = 128

# Lane-packed bf16 weight slab: wq | wk | wv | wo | w1 | w2^T | wp | wc_pad  (all rows = HIDDEN)
WQKV_OFF = 0                            # 3*HIDDEN cols (Q: 0..32, K: 32..64, V: 64..96)
WO_OFF = 3 * HIDDEN                     # 96
W1_OFF = 4 * HIDDEN                     # 128
W2T_OFF = W1_OFF + FFN                  # 256   (w2 stored transposed: (HIDDEN, FFN))
WP_OFF = W2T_OFF + FFN                  # 384
WC_OFF = WP_OFF + HIDDEN                # 416   (classifier weight zero-padded to 128 lanes)
WCOLS = WC_OFF + LANE                   # 544

# Transposed-RHS contraction: a (m,k) . b (n,k) -> (m,n)   (i.e. a @ b.T)
_NT_DIMS = (((1,), (1,)), ((), ()))


def _layer_norm(x, g, b, eps=1e-12):
    mu = jnp.mean(x, axis=-1, keepdims=True)
    var = jnp.mean((x - mu) ** 2, axis=-1, keepdims=True)
    return (x - mu) * lax.rsqrt(var + eps) * g + b


def _gelu(x):
    # tanh-approximation GELU (BERT activation)
    c = 0.7978845608028654  # sqrt(2/pi)
    return 0.5 * x * (1.0 + jnp.tanh(c * (x + 0.044715 * x * x * x)))


def bert_classifier_kernel(
    x_ref,      # (BS, HIDDEN) f32 embeddings
    mask_ref,   # (BS, BS) f32 additive attention bias (block-diagonal + valid_length)
    wcol_ref,   # (HIDDEN, WCOLS) bf16 lane-packed weight slab
    bias_ref,   # (8, 128) f32 bias / LayerNorm slab
    out_ref,    # (BS, 128) f32 lane-dense logits
):
    x = x_ref[...]                                        # f32 residual path
    xb = x.astype(jnp.bfloat16)                           # MXU operand
    mask = mask_ref[...]

    # Hoisted bias / LayerNorm parameter loads.
    brow0 = bias_ref[0:1, :]
    bqkv = brow0[:, 0:3 * HIDDEN]                         # bq|bk|bv contiguous
    bo = brow0[:, 3 * HIDDEN:4 * HIDDEN]
    b1 = bias_ref[1:2, :]                                 # (1, FFN)
    brow2 = bias_ref[2:3, :]
    b2 = brow2[:, 0:HIDDEN]
    ln1g = brow2[:, HIDDEN:2 * HIDDEN]
    ln1b = brow2[:, 2 * HIDDEN:3 * HIDDEN]
    ln2g = brow2[:, 3 * HIDDEN:4 * HIDDEN]
    brow3 = bias_ref[3:4, :]
    ln2b = brow3[:, 0:HIDDEN]
    bp = brow3[:, HIDDEN:2 * HIDDEN]
    bc = bias_ref[4:5, :]                                 # (1, 128), zero-padded

    # Fused QKV projection: single (BS,H)@(H,3H) MXU dot.
    qkv = jnp.dot(xb, wcol_ref[:, WQKV_OFF:WQKV_OFF + 3 * HIDDEN],
                  preferred_element_type=jnp.float32) + bqkv          # (BS, 3H) f32

    scale = 1.0 / (HEAD_DIM ** 0.5)
    ctx_heads = []
    for h in range(NUM_HEADS):                            # static unroll over 2 heads
        c0 = h * HEAD_DIM
        q = qkv[:, c0:c0 + HEAD_DIM].astype(jnp.bfloat16)
        k = qkv[:, HIDDEN + c0:HIDDEN + c0 + HEAD_DIM].astype(jnp.bfloat16)
        v = qkv[:, 2 * HIDDEN + c0:2 * HIDDEN + c0 + HEAD_DIM].astype(jnp.bfloat16)

        # Block-diagonal scores over all BS rows: (BS,HD) . (BS,HD)^T -> (BS,BS)
        s = lax.dot_general(q, k, _NT_DIMS, preferred_element_type=jnp.float32)
        s = s * scale + mask
        s = s - jnp.max(s, axis=-1, keepdims=True)
        p = jnp.exp(s)
        p = p * pl.reciprocal(jnp.sum(p, axis=-1, keepdims=True), approx=True)

        ctx_heads.append(jnp.dot(p.astype(jnp.bfloat16), v,
                                 preferred_element_type=jnp.float32))  # (BS, HD)

    # One output-projection dot on the lane-concatenated heads (== concat + wo).
    ctx = jnp.concatenate(ctx_heads, axis=-1)             # (BS, H)
    attn_out = jnp.dot(ctx.astype(jnp.bfloat16), wcol_ref[:, WO_OFF:WO_OFF + HIDDEN],
                       preferred_element_type=jnp.float32) + bo

    x1 = _layer_norm(x + attn_out, ln1g, ln1b)

    h1 = _gelu(jnp.dot(x1.astype(jnp.bfloat16), wcol_ref[:, W1_OFF:W1_OFF + FFN],
                       preferred_element_type=jnp.float32) + b1)       # (BS, FFN)
    # w2 stored transposed (H, FFN): ffn = h1 @ w2 == h1 . (w2^T)^T
    ffn_out = lax.dot_general(h1.astype(jnp.bfloat16),
                              wcol_ref[:, W2T_OFF:W2T_OFF + FFN],
                              _NT_DIMS, preferred_element_type=jnp.float32) + b2
    x2 = _layer_norm(x1 + ffn_out, ln2g, ln2b)

    # Pooler + classifier on all BS rows (trivial extra compute) -> one unmasked
    # lane-dense (BS, 128) store; wrapper keeps CLS rows / real classes.
    pooled = jnp.tanh(jnp.dot(x2.astype(jnp.bfloat16),
                              wcol_ref[:, WP_OFF:WP_OFF + HIDDEN],
                              preferred_element_type=jnp.float32) + bp)
    logits = jnp.dot(pooled.astype(jnp.bfloat16),
                     wcol_ref[:, WC_OFF:WC_OFF + LANE],
                     preferred_element_type=jnp.float32) + bc
    out_ref[...] = logits


def make_params(key):
    ks = jax.random.split(key, 16)
    s = 0.02
    return {
        "tok_emb": s * jax.random.normal(ks[0], (VOCAB, HIDDEN), jnp.float32),
        "seg_emb": s * jax.random.normal(ks[1], (2, HIDDEN), jnp.float32),
        "pos_emb": s * jax.random.normal(ks[2], (SEQ, HIDDEN), jnp.float32),
        "wq": s * jax.random.normal(ks[3], (HIDDEN, HIDDEN), jnp.float32),
        "bq": jnp.zeros((1, HIDDEN), jnp.float32),
        "wk": s * jax.random.normal(ks[4], (HIDDEN, HIDDEN), jnp.float32),
        "bk": jnp.zeros((1, HIDDEN), jnp.float32),
        "wv": s * jax.random.normal(ks[5], (HIDDEN, HIDDEN), jnp.float32),
        "bv": jnp.zeros((1, HIDDEN), jnp.float32),
        "wo": s * jax.random.normal(ks[6], (HIDDEN, HIDDEN), jnp.float32),
        "bo": jnp.zeros((1, HIDDEN), jnp.float32),
        "ln1g": jnp.ones((1, HIDDEN), jnp.float32),
        "ln1b": jnp.zeros((1, HIDDEN), jnp.float32),
        "w1": s * jax.random.normal(ks[7], (HIDDEN, FFN), jnp.float32),
        "b1": jnp.zeros((1, FFN), jnp.float32),
        "w2": s * jax.random.normal(ks[8], (FFN, HIDDEN), jnp.float32),
        "b2": jnp.zeros((1, HIDDEN), jnp.float32),
        "ln2g": jnp.ones((1, HIDDEN), jnp.float32),
        "ln2b": jnp.zeros((1, HIDDEN), jnp.float32),
        "wp": s * jax.random.normal(ks[9], (HIDDEN, HIDDEN), jnp.float32),
        "bp": jnp.zeros((1, HIDDEN), jnp.float32),
        "wc": s * jax.random.normal(ks[10], (HIDDEN, NUM_CLASSES), jnp.float32),
        "bc": jnp.zeros((1, NUM_CLASSES), jnp.float32),
    }


def pack_params(params):
    """One-time packing (outside the per-call path): 2 kernel slabs + embedding tables."""
    wc_pad = jnp.zeros((HIDDEN, LANE), jnp.float32).at[:, :NUM_CLASSES].set(params["wc"])
    wcol = jnp.concatenate(
        [params["wq"], params["wk"], params["wv"], params["wo"],
         params["w1"], params["w2"].T, params["wp"], wc_pad],
        axis=1).astype(jnp.bfloat16)                                   # (H, 544) bf16

    z32 = jnp.zeros((1, HIDDEN), jnp.float32)
    row0 = jnp.concatenate([params["bq"], params["bk"], params["bv"], params["bo"]], axis=1)
    row1 = params["b1"]
    row2 = jnp.concatenate([params["b2"], params["ln1g"], params["ln1b"], params["ln2g"]],
                           axis=1)
    row3 = jnp.concatenate([params["ln2b"], params["bp"], z32, z32], axis=1)
    row4 = jnp.zeros((1, LANE), jnp.float32).at[:, :NUM_CLASSES].set(params["bc"])
    bias = jnp.concatenate(
        [row0, row1, row2, row3, row4, jnp.zeros((3, LANE), jnp.float32)], axis=0)  # (8,128)

    return {"tok_emb": params["tok_emb"], "seg_emb": params["seg_emb"],
            "pos_emb": params["pos_emb"], "wcol": wcol, "bias": bias}


@jax.jit
def bert_classifier_forward(token_ids, valid_length, segment_ids, packed):
    """Pallas-backed forward. token_ids/segment_ids: [B, S] int32; valid_length: [B] int32."""
    B, S = token_ids.shape
    # Glue: embedding gathers in plain JAX, flattened to (B*S, H) rows for the kernel.
    emb = (packed["tok_emb"][token_ids]
           + packed["seg_emb"][segment_ids]
           + packed["pos_emb"][None, :, :]).astype(jnp.float32)        # [B, S, H]
    x = emb.reshape(B * S, HIDDEN)

    # gen_attention_mask -> (BS, BS) additive bias: 0 where same batch AND key < valid_len,
    # else -1e9 (also blocks cross-batch attention for the block-diagonal formulation).
    row = jnp.arange(B * S, dtype=jnp.int32)
    b_ix = row // S
    s_ix = row % S
    key_ok = s_ix < valid_length.astype(jnp.int32)[b_ix]               # (BS,)
    allow = (b_ix[:, None] == b_ix[None, :]) & key_ok[None, :]
    attn_bias = jnp.where(allow, 0.0, -1e9).astype(jnp.float32)        # (BS, BS)

    out = pl.pallas_call(
        bert_classifier_kernel,
        out_shape=jax.ShapeDtypeStruct((B * S, LANE), jnp.float32),
        grid=(1,),                                                     # single grid step
        in_specs=[
            pl.BlockSpec((B * S, HIDDEN), lambda i: (0, 0)),
            pl.BlockSpec((B * S, B * S), lambda i: (0, 0)),
            pl.BlockSpec((HIDDEN, WCOLS), lambda i: (0, 0)),
            pl.BlockSpec((8, LANE), lambda i: (0, 0)),
        ],
        out_specs=pl.BlockSpec((B * S, LANE), lambda i: (0, 0)),
        compiler_params=pltpu.CompilerParams(dimension_semantics=("arbitrary",)),
    )(x, attn_bias, packed["wcol"], packed["bias"])

    # CLS row per batch element, real classes only.
    return out[::S, :NUM_CLASSES]


def bert_classifier_reference(token_ids, valid_length, segment_ids, params):
    """Pure-JAX f32 reference with identical math for validation."""
    emb = (params["tok_emb"][token_ids]
           + params["seg_emb"][segment_ids]
           + params["pos_emb"][None, :, :]).astype(jnp.float32)
    pos = jnp.arange(SEQ)[None, :]
    mask = (pos < valid_length[:, None]).astype(jnp.float32)           # [B, S]
    neg = (1.0 - mask) * (-1e9)

    def one(x, nb):
        q = x @ params["wq"] + params["bq"]
        k = x @ params["wk"] + params["bk"]
        v = x @ params["wv"] + params["bv"]
        scale = 1.0 / (HEAD_DIM ** 0.5)
        ctxs = []
        for h in range(NUM_HEADS):
            sl = slice(h * HEAD_DIM, (h + 1) * HEAD_DIM)
            s = q[:, sl] @ k[:, sl].T * scale + nb[None, :]
            s = s - jnp.max(s, axis=-1, keepdims=True)
            p = jnp.exp(s)
            p = p / jnp.sum(p, axis=-1, keepdims=True)
            ctxs.append(p @ v[:, sl])
        ctx = jnp.concatenate(ctxs, axis=-1)
        x1 = _layer_norm(x + ctx @ params["wo"] + params["bo"],
                         params["ln1g"], params["ln1b"])
        h1 = _gelu(x1 @ params["w1"] + params["b1"])
        x2 = _layer_norm(x1 + h1 @ params["w2"] + params["b2"],
                         params["ln2g"], params["ln2b"])
        pooled = jnp.tanh(x2[0:1, :] @ params["wp"] + params["bp"])
        return (pooled @ params["wc"] + params["bc"])[0]

    return jnp.stack([one(emb[b], neg[b]) for b in range(emb.shape[0])], axis=0)


if __name__ == "__main__":
    key = jax.random.PRNGKey(0)
    pkey, tkey, skey = jax.random.split(key, 3)
    params = make_params(pkey)
    packed = pack_params(params)          # one-time packing, outside the jitted hot path

    token_ids = jax.random.randint(tkey, (BATCH, SEQ), 0, VOCAB, dtype=jnp.int32)
    segment_ids = jax.random.randint(skey, (BATCH, SEQ), 0, 2, dtype=jnp.int32)
    valid_length = jnp.array([5, SEQ], dtype=jnp.int32)

    logits = bert_classifier_forward(token_ids, valid_length, segment_ids, packed)
    logits = jax.block_until_ready(logits)

    ref = bert_classifier_reference(token_ids, valid_length, segment_ids, params)
    assert logits.shape == (BATCH, NUM_CLASSES)
    assert bool(jnp.all(jnp.isfinite(logits)))
    assert bool(jnp.allclose(logits, ref, rtol=2e-2, atol=5e-3)), (logits, ref)

    print("KERNEL_OK")
</pallas_src>

<mosaic_0001>
module attributes {stable_mosaic.version = 11 : i64} {
  func.func @bert_classifier_kernel(%arg0: i32, %arg1: memref<16x32xf32, #tpu.memory_space<vmem>>, %arg2: memref<16x16xf32, #tpu.memory_space<vmem>>, %arg3: memref<32x544xbf16, #tpu.memory_space<vmem>>, %arg4: memref<8x128xf32, #tpu.memory_space<vmem>>, %arg5: memref<16x128xf32, #tpu.memory_space<vmem>>) attributes {dimension_semantics = [#tpu.dimension_semantics<arbitrary>], iteration_bounds = array<i64: 1>, scalar_prefetch = 0 : i64, scratch_operands = 0 : i64, tpu.core_type = #tpu.core_type<tc>, window_params = [{pipeline_mode = #tpu.pipeline_mode<synchronous>, transform_indices = @transform_0, window_bounds = array<i64: 16, 32>}, {pipeline_mode = #tpu.pipeline_mode<synchronous>, transform_indices = @transform_1, window_bounds = array<i64: 16, 16>}, {pipeline_mode = #tpu.pipeline_mode<synchronous>, transform_indices = @transform_2, window_bounds = array<i64: 32, 544>}, {pipeline_mode = #tpu.pipeline_mode<synchronous>, transform_indices = @transform_3, window_bounds = array<i64: 8, 128>}, {pipeline_mode = #tpu.pipeline_mode<synchronous>, transform_indices = @transform_4, window_bounds = array<i64: 16, 128>}]} {
    %c0 = arith.constant 0 : index
    %c0_0 = arith.constant 0 : index
    %0 = vector.load %arg1[%c0, %c0_0] : memref<16x32xf32, #tpu.memory_space<vmem>>, vector<16x32xf32>
    %1 = arith.truncf %0 : vector<16x32xf32> to vector<16x32xbf16>
    %c0_1 = arith.constant 0 : index
    %c0_2 = arith.constant 0 : index
    %2 = vector.load %arg2[%c0_1, %c0_2] : memref<16x16xf32, #tpu.memory_space<vmem>>, vector<16x16xf32>
    %c0_3 = arith.constant 0 : index
    %c0_4 = arith.constant 0 : index
    %3 = vector.load %arg4[%c0_3, %c0_4] : memref<8x128xf32, #tpu.memory_space<vmem>>, vector<1x128xf32>
    %4 = vector.extract_strided_slice %3 {offsets = [0, 0], sizes = [1, 96], strides = [1, 1]} : vector<1x128xf32> to vector<1x96xf32>
    %5 = vector.extract_strided_slice %3 {offsets = [0, 96], sizes = [1, 32], strides = [1, 1]} : vector<1x128xf32> to vector<1x32xf32>
    %c1 = arith.constant 1 : index
    %c0_5 = arith.constant 0 : index
    %6 = vector.load %arg4[%c1, %c0_5] : memref<8x128xf32, #tpu.memory_space<vmem>>, vector<1x128xf32>
    %c2 = arith.constant 2 : index
    %c0_6 = arith.constant 0 : index
    %7 = vector.load %arg4[%c2, %c0_6] : memref<8x128xf32, #tpu.memory_space<vmem>>, vector<1x128xf32>
    %8 = vector.extract_strided_slice %7 {offsets = [0, 0], sizes = [1, 32], strides = [1, 1]} : vector<1x128xf32> to vector<1x32xf32>
    %9 = vector.extract_strided_slice %7 {offsets = [0, 32], sizes = [1, 32], strides = [1, 1]} : vector<1x128xf32> to vector<1x32xf32>
    %10 = vector.extract_strided_slice %7 {offsets = [0, 64], sizes = [1, 32], strides = [1, 1]} : vector<1x128xf32> to vector<1x32xf32>
    %11 = vector.extract_strided_slice %7 {offsets = [0, 96], sizes = [1, 32], strides = [1, 1]} : vector<1x128xf32> to vector<1x32xf32>
    %c3 = arith.constant 3 : index
    %c0_7 = arith.constant 0 : index
    %12 = vector.load %arg4[%c3, %c0_7] : memref<8x128xf32, #tpu.memory_space<vmem>>, vector<1x128xf32>
    %13 = vector.extract_strided_slice %12 {offsets = [0, 0], sizes = [1, 32], strides = [1, 1]} : vector<1x128xf32> to vector<1x32xf32>
    %14 = vector.extract_strided_slice %12 {offsets = [0, 32], sizes = [1, 32], strides = [1, 1]} : vector<1x128xf32> to vector<1x32xf32>
    %c4 = arith.constant 4 : index
    %c0_8 = arith.constant 0 : index
    %15 = vector.load %arg4[%c4, %c0_8] : memref<8x128xf32, #tpu.memory_space<vmem>>, vector<1x128xf32>
    %c0_9 = arith.constant 0 : index
    %c0_10 = arith.constant 0 : index
    %16 = vector.load %arg3[%c0_9, %c0_10] : memref<32x544xbf16, #tpu.memory_space<vmem>>, vector<32x96xbf16>
    %cst = arith.constant dense<0.000000e+00> : vector<16x96xf32>
    %17 = tpu.matmul %1, %16, %cst {dimension_numbers = #tpu.dot_dimension_numbers<[1], [0], [0], [1], [0, 0, 1, 1], [], []>} : vector<16x32xbf16>, vector<32x96xbf16>, vector<16x96xf32> -> vector<16x96xf32>
    %18 = vector.broadcast %4 : vector<1x96xf32> to vector<16x96xf32>
    %19 = arith.addf %17, %18 : vector<16x96xf32>
    %20 = vector.extract_strided_slice %19 {offsets = [0, 0], sizes = [16, 16], strides = [1, 1]} : vector<16x96xf32> to vector<16x16xf32>
    %21 = arith.truncf %20 : vector<16x16xf32> to vector<16x16xbf16>
    %22 = vector.extract_strided_slice %19 {offsets = [0, 32], sizes = [16, 16], strides = [1, 1]} : vector<16x96xf32> to vector<16x16xf32>
    %23 = arith.truncf %22 : vector<16x16xf32> to vector<16x16xbf16>
    %24 = vector.extract_strided_slice %19 {offsets = [0, 64], sizes = [16, 16], strides = [1, 1]} : vector<16x96xf32> to vector<16x16xf32>
    %25 = arith.truncf %24 : vector<16x16xf32> to vector<16x16xbf16>
    %cst_11 = arith.constant dense<0.000000e+00> : vector<16x16xf32>
    %26 = tpu.matmul %21, %23, %cst_11 {dimension_numbers = #tpu.dot_dimension_numbers<[1], [1], [0], [0], [0, 0, 1, 0], [], []>} : vector<16x16xbf16>, vector<16x16xbf16>, vector<16x16xf32> -> vector<16x16xf32>
    %cst_12 = arith.constant 2.500000e-01 : f32
    %27 = vector.broadcast %cst_12 : f32 to vector<16x16xf32>
    %28 = arith.mulf %26, %27 : vector<16x16xf32>
    %29 = arith.addf %28, %2 : vector<16x16xf32>
    %cst_13 = arith.constant dense<0xFF800000> : vector<16xf32>
    %30 = vector.multi_reduction <maximumf>, %29, %cst_13 [1] : vector<16x16xf32> to vector<16xf32>
    %31 = vector.shape_cast %30 : vector<16xf32> to vector<16x1xf32>
    %32 = vector.broadcast %31 : vector<16x1xf32> to vector<16x16xf32>
    %33 = arith.subf %29, %32 : vector<16x16xf32>
    %34 = math.exp %33 : vector<16x16xf32>
    %cst_14 = arith.constant dense<0.000000e+00> : vector<16xf32>
    %35 = vector.multi_reduction <add>, %34, %cst_14 [1] : vector<16x16xf32> to vector<16xf32>
    %36 = vector.shape_cast %35 : vector<16xf32> to vector<16x1xf32>
    %37 = tpu.reciprocal %36 {approx = true} : vector<16x1xf32> -> vector<16x1xf32>
    %38 = vector.broadcast %37 : vector<16x1xf32> to vector<16x16xf32>
    %39 = arith.mulf %34, %38 : vector<16x16xf32>
    %40 = arith.truncf %39 : vector<16x16xf32> to vector<16x16xbf16>
    %cst_15 = arith.constant dense<0.000000e+00> : vector<16x16xf32>
    %41 = tpu.matmul %40, %25, %cst_15 {dimension_numbers = #tpu.dot_dimension_numbers<[1], [0], [0], [1], [0, 0, 1, 1], [], []>} : vector<16x16xbf16>, vector<16x16xbf16>, vector<16x16xf32> -> vector<16x16xf32>
    %42 = vector.extract_strided_slice %19 {offsets = [0, 16], sizes = [16, 16], strides = [1, 1]} : vector<16x96xf32> to vector<16x16xf32>
    %43 = arith.truncf %42 : vector<16x16xf32> to vector<16x16xbf16>
    %44 = vector.extract_strided_slice %19 {offsets = [0, 48], sizes = [16, 16], strides = [1, 1]} : vector<16x96xf32> to vector<16x16xf32>
    %45 = arith.truncf %44 : vector<16x16xf32> to vector<16x16xbf16>
    %46 = vector.extract_strided_slice %19 {offsets = [0, 80], sizes = [16, 16], strides = [1, 1]} : vector<16x96xf32> to vector<16x16xf32>
    %47 = arith.truncf %46 : vector<16x16xf32> to vector<16x16xbf16>
    %cst_16 = arith.constant dense<0.000000e+00> : vector<16x16xf32>
    %48 = tpu.matmul %43, %45, %cst_16 {dimension_numbers = #tpu.dot_dimension_numbers<[1], [1], [0], [0], [0, 0, 1, 0], [], []>} : vector<16x16xbf16>, vector<16x16xbf16>, vector<16x16xf32> -> vector<16x16xf32>
    %cst_17 = arith.constant 2.500000e-01 : f32
    %49 = vector.broadcast %cst_17 : f32 to vector<16x16xf32>
    %50 = arith.mulf %48, %49 : vector<16x16xf32>
    %51 = arith.addf %50, %2 : vector<16x16xf32>
    %cst_18 = arith.constant dense<0xFF800000> : vector<16xf32>
    %52 = vector.multi_reduction <maximumf>, %51, %cst_18 [1] : vector<16x16xf32> to vector<16xf32>
    %53 = vector.shape_cast %52 : vector<16xf32> to vector<16x1xf32>
    %54 = vector.broadcast %53 : vector<16x1xf32> to vector<16x16xf32>
    %55 = arith.subf %51, %54 : vector<16x16xf32>
    %56 = math.exp %55 : vector<16x16xf32>
    %cst_19 = arith.constant dense<0.000000e+00> : vector<16xf32>
    %57 = vector.multi_reduction <add>, %56, %cst_19 [1] : vector<16x16xf32> to vector<16xf32>
    %58 = vector.shape_cast %57 : vector<16xf32> to vector<16x1xf32>
    %59 = tpu.reciprocal %58 {approx = true} : vector<16x1xf32> -> vector<16x1xf32>
    %60 = vector.broadcast %59 : vector<16x1xf32> to vector<16x16xf32>
    %61 = arith.mulf %56, %60 : vector<16x16xf32>
    %62 = arith.truncf %61 : vector<16x16xf32> to vector<16x16xbf16>
    %cst_20 = arith.constant dense<0.000000e+00> : vector<16x16xf32>
    %63 = tpu.matmul %62, %47, %cst_20 {dimension_numbers = #tpu.dot_dimension_numbers<[1], [0], [0], [1], [0, 0, 1, 1], [], []>} : vector<16x16xbf16>, vector<16x16xbf16>, vector<16x16xf32> -> vector<16x16xf32>
    %64 = tpu.concatenate %41, %63 in 1 : vector<16x16xf32>, vector<16x16xf32> -> vector<16x32xf32>
    %65 = arith.truncf %64 : vector<16x32xf32> to vector<16x32xbf16>
    %c0_21 = arith.constant 0 : index
    %c96 = arith.constant 96 : index
    %66 = vector.load %arg3[%c0_21, %c96] : memref<32x544xbf16, #tpu.memory_space<vmem>>, vector<32x32xbf16>
    %cst_22 = arith.constant dense<0.000000e+00> : vector<16x32xf32>
    %67 = tpu.matmul %65, %66, %cst_22 {dimension_numbers = #tpu.dot_dimension_numbers<[1], [0], [0], [1], [0, 0, 1, 1], [], []>} : vector<16x32xbf16>, vector<32x32xbf16>, vector<16x32xf32> -> vector<16x32xf32>
    %68 = vector.broadcast %5 : vector<1x32xf32> to vector<16x32xf32>
    %69 = arith.addf %67, %68 : vector<16x32xf32>
    %70 = arith.addf %0, %69 : vector<16x32xf32>
    %cst_23 = arith.constant dense<0.000000e+00> : vector<16xf32>
    %71 = vector.multi_reduction <add>, %70, %cst_23 [1] : vector<16x32xf32> to vector<16xf32>
    %72 = vector.shape_cast %71 : vector<16xf32> to vector<16x1xf32>
    %cst_24 = arith.constant 3.200000e+01 : f32
    %73 = vector.broadcast %cst_24 : f32 to vector<16x1xf32>
    %74 = arith.divf %72, %73 : vector<16x1xf32>
    %75 = vector.broadcast %74 : vector<16x1xf32> to vector<16x32xf32>
    %76 = arith.subf %70, %75 : vector<16x32xf32>
    %77 = arith.mulf %76, %76 : vector<16x32xf32>
    %cst_25 = arith.constant dense<0.000000e+00> : vector<16xf32>
    %78 = vector.multi_reduction <add>, %77, %cst_25 [1] : vector<16x32xf32> to vector<16xf32>
    %79 = vector.shape_cast %78 : vector<16xf32> to vector<16x1xf32>
    %cst_26 = arith.constant 3.200000e+01 : f32
    %80 = vector.broadcast %cst_26 : f32 to vector<16x1xf32>
    %81 = arith.divf %79, %80 : vector<16x1xf32>
    %82 = vector.broadcast %74 : vector<16x1xf32> to vector<16x32xf32>
    %83 = arith.subf %70, %82 : vector<16x32xf32>
    %cst_27 = arith.constant 9.99999996E-13 : f32
    %84 = vector.broadcast %cst_27 : f32 to vector<16x1xf32>
    %85 = arith.addf %81, %84 : vector<16x1xf32>
    %86 = math.rsqrt %85 : vector<16x1xf32>
    %87 = vector.broadcast %86 : vector<16x1xf32> to vector<16x32xf32>
    %88 = arith.mulf %83, %87 : vector<16x32xf32>
    %89 = vector.broadcast %9 : vector<1x32xf32> to vector<16x32xf32>
    %90 = arith.mulf %88, %89 : vector<16x32xf32>
    %91 = vector.broadcast %10 : vector<1x32xf32> to vector<16x32xf32>
    %92 = arith.addf %90, %91 : vector<16x32xf32>
    %93 = arith.truncf %92 : vector<16x32xf32> to vector<16x32xbf16>
    %c0_28 = arith.constant 0 : index
    %c128 = arith.constant 128 : index
    %94 = vector.load %arg3[%c0_28, %c128] : memref<32x544xbf16, #tpu.memory_space<vmem>>, vector<32x128xbf16>
    %cst_29 = arith.constant dense<0.000000e+00> : vector<16x128xf32>
    %95 = tpu.matmul %93, %94, %cst_29 {dimension_numbers = #tpu.dot_dimension_numbers<[1], [0], [0], [1], [0, 0, 1, 1], [], []>} : vector<16x32xbf16>, vector<32x128xbf16>, vector<16x128xf32> -> vector<16x128xf32>
    %96 = vector.broadcast %6 : vector<1x128xf32> to vector<16x128xf32>
    %97 = arith.addf %95, %96 : vector<16x128xf32>
    %cst_30 = arith.constant 5.000000e-01 : f32
    %98 = vector.broadcast %cst_30 : f32 to vector<16x128xf32>
    %99 = arith.mulf %98, %97 : vector<16x128xf32>
    %cst_31 = arith.constant 4.471500e-02 : f32
    %100 = vector.broadcast %cst_31 : f32 to vector<16x128xf32>
    %101 = arith.mulf %100, %97 : vector<16x128xf32>
    %102 = arith.mulf %101, %97 : vector<16x128xf32>
    %103 = arith.mulf %102, %97 : vector<16x128xf32>
    %104 = arith.addf %97, %103 : vector<16x128xf32>
    %cst_32 = arith.constant 0.797884583 : f32
    %105 = vector.broadcast %cst_32 : f32 to vector<16x128xf32>
    %106 = arith.mulf %105, %104 : vector<16x128xf32>
    %107 = math.tanh %106 : vector<16x128xf32>
    %cst_33 = arith.constant 1.000000e+00 : f32
    %108 = vector.broadcast %cst_33 : f32 to vector<16x128xf32>
    %109 = arith.addf %108, %107 : vector<16x128xf32>
    %110 = arith.mulf %99, %109 : vector<16x128xf32>
    %111 = arith.truncf %110 : vector<16x128xf32> to vector<16x128xbf16>
    %c0_34 = arith.constant 0 : index
    %c256 = arith.constant 256 : index
    %112 = vector.load %arg3[%c0_34, %c256] : memref<32x544xbf16, #tpu.memory_space<vmem>>, vector<32x128xbf16>
    %cst_35 = arith.constant dense<0.000000e+00> : vector<16x32xf32>
    %113 = tpu.matmul %111, %112, %cst_35 {dimension_numbers = #tpu.dot_dimension_numbers<[1], [1], [0], [0], [0, 0, 1, 0], [], []>} : vector<16x128xbf16>, vector<32x128xbf16>, vector<16x32xf32> -> vector<16x32xf32>
    %114 = vector.broadcast %8 : vector<1x32xf32> to vector<16x32xf32>
    %115 = arith.addf %113, %114 : vector<16x32xf32>
    %116 = arith.addf %92, %115 : vector<16x32xf32>
    %cst_36 = arith.constant dense<0.000000e+00> : vector<16xf32>
    %117 = vector.multi_reduction <add>, %116, %cst_36 [1] : vector<16x32xf32> to vector<16xf32>
    %118 = vector.shape_cast %117 : vector<16xf32> to vector<16x1xf32>
    %cst_37 = arith.constant 3.200000e+01 : f32
    %119 = vector.broadcast %cst_37 : f32 to vector<16x1xf32>
    %120 = arith.divf %118, %119 : vector<16x1xf32>
    %121 = vector.broadcast %120 : vector<16x1xf32> to vector<16x32xf32>
    %122 = arith.subf %116, %121 : vector<16x32xf32>
    %123 = arith.mulf %122, %122 : vector<16x32xf32>
    %cst_38 = arith.constant dense<0.000000e+00> : vector<16xf32>
    %124 = vector.multi_reduction <add>, %123, %cst_38 [1] : vector<16x32xf32> to vector<16xf32>
    %125 = vector.shape_cast %124 : vector<16xf32> to vector<16x1xf32>
    %cst_39 = arith.constant 3.200000e+01 : f32
    %126 = vector.broadcast %cst_39 : f32 to vector<16x1xf32>
    %127 = arith.divf %125, %126 : vector<16x1xf32>
    %128 = vector.broadcast %120 : vector<16x1xf32> to vector<16x32xf32>
    %129 = arith.subf %116, %128 : vector<16x32xf32>
    %cst_40 = arith.constant 9.99999996E-13 : f32
    %130 = vector.broadcast %cst_40 : f32 to vector<16x1xf32>
    %131 = arith.addf %127, %130 : vector<16x1xf32>
    %132 = math.rsqrt %131 : vector<16x1xf32>
    %133 = vector.broadcast %132 : vector<16x1xf32> to vector<16x32xf32>
    %134 = arith.mulf %129, %133 : vector<16x32xf32>
    %135 = vector.broadcast %11 : vector<1x32xf32> to vector<16x32xf32>
    %136 = arith.mulf %134, %135 : vector<16x32xf32>
    %137 = vector.broadcast %13 : vector<1x32xf32> to vector<16x32xf32>
    %138 = arith.addf %136, %137 : vector<16x32xf32>
    %139 = arith.truncf %138 : vector<16x32xf32> to vector<16x32xbf16>
    %c0_41 = arith.constant 0 : index
    %c384 = arith.constant 384 : index
    %140 = vector.load %arg3[%c0_41, %c384] : memref<32x544xbf16, #tpu.memory_space<vmem>>, vector<32x32xbf16>
    %cst_42 = arith.constant dense<0.000000e+00> : vector<16x32xf32>
    %141 = tpu.matmul %139, %140, %cst_42 {dimension_numbers = #tpu.dot_dimension_numbers<[1], [0], [0], [1], [0, 0, 1, 1], [], []>} : vector<16x32xbf16>, vector<32x32xbf16>, vector<16x32xf32> -> vector<16x32xf32>
    %142 = vector.broadcast %14 : vector<1x32xf32> to vector<16x32xf32>
    %143 = arith.addf %141, %142 : vector<16x32xf32>
    %144 = math.tanh %143 : vector<16x32xf32>
    %145 = arith.truncf %144 : vector<16x32xf32> to vector<16x32xbf16>
    %c0_43 = arith.constant 0 : index
    %c416 = arith.constant 416 : index
    %146 = vector.load %arg3[%c0_43, %c416] : memref<32x544xbf16, #tpu.memory_space<vmem>>, vector<32x128xbf16>
    %cst_44 = arith.constant dense<0.000000e+00> : vector<16x128xf32>
    %147 = tpu.matmul %145, %146, %cst_44 {dimension_numbers = #tpu.dot_dimension_numbers<[1], [0], [0], [1], [0, 0, 1, 1], [], []>} : vector<16x32xbf16>, vector<32x128xbf16>, vector<16x128xf32> -> vector<16x128xf32>
    %148 = vector.broadcast %15 : vector<1x128xf32> to vector<16x128xf32>
    %149 = arith.addf %147, %148 : vector<16x128xf32>
    %c0_45 = arith.constant 0 : index
    %c0_46 = arith.constant 0 : index
    %150 = vector.load %arg5[%c0_45, %c0_46] : memref<16x128xf32, #tpu.memory_space<vmem>>, vector<16x128xf32>
    tpu.vector_store %arg5[%c0_45, %c0_46], %149 {strides = array<i32>} : memref<16x128xf32, #tpu.memory_space<vmem>>, vector<16x128xf32>,
    return
  }
  func.func @transform_0(%arg0: i32) -> (i32, i32) {
    %c0_i32 = arith.constant 0 : i32
    %c0_i32_0 = arith.constant 0 : i32
    %c0_i32_1 = arith.constant 0 : i32
    return %c0_i32, %c0_i32_0 : i32, i32
  }
  func.func @transform_1(%arg0: i32) -> (i32, i32) {
    %c0_i32 = arith.constant 0 : i32
    %c0_i32_0 = arith.constant 0 : i32
    %c0_i32_1 = arith.constant 0 : i32
    return %c0_i32, %c0_i32_0 : i32, i32
  }
  func.func @transform_2(%arg0: i32) -> (i32, i32) {
    %c0_i32 = arith.constant 0 : i32
    %c0_i32_0 = arith.constant 0 : i32
    %c0_i32_1 = arith.constant 0 : i32
    return %c0_i32, %c0_i32_0 : i32, i32
  }
  func.func @transform_3(%arg0: i32) -> (i32, i32) {
    %c0_i32 = arith.constant 0 : i32
    %c0_i32_0 = arith.constant 0 : i32
    %c0_i32_1 = arith.constant 0 : i32
    return %c0_i32, %c0_i32_0 : i32, i32
  }
  func.func @transform_4(%arg0: i32) -> (i32, i32) {
    %c0_i32 = arith.constant 0 : i32
    %c0_i32_0 = arith.constant 0 : i32
    %c0_i32_1 = arith.constant 0 : i32
    return %c0_i32, %c0_i32_0 : i32, i32
  }
}

</mosaic_0001>

<llo_original>
// kernel: bert_classifier_forward.1
$region0: #{bert_classifier_forward.1}
  #allocation0 [shape = 'u32[]', space=smem, size = 0x4, offset = 0x4, fixed_abs, tag = 'smem constant byte address 0x4 - core index']
  #allocation1 [shape = 'u32[144,128]{1,0:T(1,128)}', space=vmem, size = 0x12000, scoped, tag = 'internal scratch']
  %s0 = inlined_call_operand.vmem [shape: f32[16,32], index: 0, kind: input, shape index: {}]
  %s1 = inlined_call_operand.vmem [shape: f32[16,16], index: 1, kind: input, shape index: {}]
  %s2 = inlined_call_operand.vmem [shape: bf16[32,544], index: 2, kind: input, shape index: {}]
  %s3 = inlined_call_operand.vmem [shape: f32[8,128], index: 3, kind: input, shape index: {}]
  %s4 = inlined_call_operand.vmem [shape: f32[16,128], index: 4, kind: output, shape index: {}]
  %s5 = sld [smem:[#allocation0]]
  $region26: #{bert_classifier_forward.1} parent=0
    _
  %s7 = ssub.s32 1, %s5
  %s8 = scalar_select 0, %s7, %s5
  // Predicated region
  $region2: #{bert_classifier_forward.1} parent=0 // pred_check
    _
  $region3: #{bert_classifier_forward.1} parent=0 // pred_check_branch
    %10 = sbr.rel (0) target = $region5
  $region4: #{bert_classifier_forward.1} parent=0 // pred_region
    _
  $region5: #{bert_classifier_forward.1} parent=0 // pred_fallthru
    _
  // Predicated region
  $region6: #{bert_classifier_forward.1} parent=0 // pred_check
    _
  $region7: #{bert_classifier_forward.1} parent=0 // pred_check_branch
    %12 = sbr.rel (0) target = $region9
  $region8: #{bert_classifier_forward.1} parent=0 // pred_region
    _
  $region9: #{bert_classifier_forward.1} parent=0 // pred_fallthru
    _
  // Predicated region
  $region10: #{bert_classifier_forward.1} parent=0 // pred_check
    _
  $region11: #{bert_classifier_forward.1} parent=0 // pred_check_branch
    %14 = sbr.rel (0) target = $region13
  $region12: #{bert_classifier_forward.1} parent=0 // pred_region
    _
  $region13: #{bert_classifier_forward.1} parent=0 // pred_fallthru
    _
  // Predicated region
  $region14: #{bert_classifier_forward.1} parent=0 // pred_check
    _
  $region15: #{bert_classifier_forward.1} parent=0 // pred_check_branch
    %16 = sbr.rel (0) target = $region17
  $region16: #{bert_classifier_forward.1} parent=0 // pred_region
    _
  $region17: #{bert_classifier_forward.1} parent=0 // pred_fallthru
    _
  %v18 = vld [vmem:[%s0] sm:$0xff]
  %v19 = vld [vmem:[%s0 + $0x8] sm:$0xff]
  %v20 = vpack.c.bf16 %v19, %v18
  %v21 = vld [vmem:[%s1] sm:$0xff]
  %v22 = vld [vmem:[%s1 + $0x8] sm:$0xff]
  %v23 = vld [vmem:[%s3] sm:$0x1]
  %v24 = vld [vmem:[%s3 + $0x1] sm:$0x1]
  %v25 = vld [vmem:[%s3 + $0x2] sm:$0x1]
  %v26 = vld [vmem:[%s3 + $0x3] sm:$0x1]
  %v27 = vld [vmem:[%s3 + $0x4] sm:$0x1]
  %v28 = vld [vmem:[%s2] sm:$0xf]
  %v29 = vld [vmem:[%s2 + $0x14] sm:$0xf]
  %v30 = vld [vmem:[%s2 + $0x28] sm:$0xf]
  %v31 = vld [vmem:[%s2 + $0x3c] sm:$0xf]
  %v32 = vlaneseq
  %v33 = vshrl.u32 %v32, 7
  %v34 = vsub.s32 0, %v33
  %v35 = vrot.slane %v23, %v34
  %v40 = vunpack.c.l.b16 %v28
  %v41 = vunpack.c.l.b16 %v29
  %v42 = vunpack.c.l.b16 %v30
  %v43 = vunpack.c.l.b16 %v31
  %v44 = vpack.c.b16 %v41, %v40
  %v45 = vpack.c.b16 %v43, %v42
  %vm48 = vcmask 261120
  %v50 = vsel %vm48, %v20, 0
  %52 = vmatprep.subr.bf16.mxu0 0
  %53 = vmatpush1.bf16.msra.mxu0 %v44
  %54 = vmatprep.subr.bf16.mxu0 0
  %55 = vmatpush1.bf16.msra.mxu0 %v45
  %56 = vmatprep.subr.bf16.mxu0 0
  %57 = vmatpush1.bf16.msra.mxu0 0
  %58 = vmatprep.subr.bf16.mxu0 0
  %59 = vmatpush1.bf16.msra.mxu0 0
  %60 = vmatprep.subr.bf16.mxu0 0
  %61 = vmatpush1.bf16.msra.mxu0 0
  %62 = vmatprep.subr.bf16.mxu0 0
  %63 = vmatpush1.bf16.msra.mxu0 0
  %64 = vmatprep.subr.bf16.mxu0 0
  %65 = vmatpush1.bf16.msra.mxu0 0
  %66 = vmatprep.subr.bf16.mxu0 0
  %67 = vmatpush1.bf16.msra.mxu0 0
  %68 = vmatprep.subr.bf16.mxu0 0
  %69 = vmatpush1.bf16.msra.mxu0 0
  %70 = vmatprep.subr.bf16.mxu0 0
  %71 = vmatpush1.bf16.msra.mxu0 0
  %72 = vmatprep.subr.bf16.mxu0 0
  %73 = vmatpush1.bf16.msra.mxu0 0
  %74 = vmatprep.subr.bf16.mxu0 0
  %75 = vmatpush1.bf16.msra.mxu0 0
  %76 = vmatprep.subr.bf16.mxu0 0
  %77 = vmatpush1.bf16.msra.mxu0 0
  %78 = vmatprep.subr.bf16.mxu0 0
  %79 = vmatpush1.bf16.msra.mxu0 0
  %80 = vmatprep.subr.bf16.mxu0 0
  %81 = vmatpush1.bf16.msra.mxu0 0
  %82 = vmatprep.subr.bf16.mxu0 0
  %83 = vmatpush1.bf16.msra.mxu0 0
  %84 = vmatprep.mubr.bf16.mxu0 0
  %85 = vmatmul.mubr.bf16.gmra.mrb[0].mxu0 %v50
  %v86 = vpop.f32.mrb[0].mxu0
  %v87 = vadd.f32 %v35, %v86
  %v88 = vpop.f32.mrb[0].mxu0
  %v89 = vpop.f32.mrb[0].mxu0
  %v90 = vadd.f32 %v35, %v89
  %v91 = vpop.f32.mrb[0].mxu0
  %92 = vdwg.mxu0
  %v93 = vpack.c.bf16 %v90, %v87
  %95 = vrot.lane.b32.xlu0 %v93, 96
  %v96 = vpop.permute.xlu0 %95
  %vm97 = vcmask 130048
  %v99 = vsel %vm97, %v93, 0
  %v102 = vsel %vm97, %v96, 0
  %104 = vmatprep.subr.bf16.mxu0 0
  %105 = vmatpush1.bf16.xpose.msra.mxu0 %v102
  %106 = vmatprep.subr.bf16.mxu0 0
  %107 = vmatpush1.bf16.xpose.msra.mxu0 0
  %108 = vmatprep.subr.bf16.mxu0 0
  %109 = vmatpush1.bf16.xpose.msra.mxu0 0
  %110 = vmatprep.subr.bf16.mxu0 0
  %111 = vmatpush1.bf16.xpose.msra.mxu0 0
  %112 = vmatprep.subr.bf16.mxu0 0
  %113 = vmatpush1.bf16.xpose.msra.mxu0 0
  %114 = vmatprep.subr.bf16.mxu0 0
  %115 = vmatpush1.bf16.xpose.msra.mxu0 0
  %116 = vmatprep.subr.bf16.mxu0 0
  %117 = vmatpush1.bf16.xpose.msra.mxu0 0
  %118 = vmatprep.subr.bf16.mxu0 0
  %119 = vmatpush1.bf16.xpose.msra.mxu0 0
  %120 = vmatprep.subr.bf16.mxu0 0
  %121 = vmatpush1.bf16.xpose.msra.mxu0 0
  %122 = vmatprep.subr.bf16.mxu0 0
  %123 = vmatpush1.bf16.xpose.msra.mxu0 0
  %124 = vmatprep.subr.bf16.mxu0 0
  %125 = vmatpush1.bf16.xpose.msra.mxu0 0
  %126 = vmatprep.subr.bf16.mxu0 0
  %127 = vmatpush1.bf16.xpose.msra.mxu0 0
  %128 = vmatprep.subr.bf16.mxu0 0
  %129 = vmatpush1.bf16.xpose.msra.mxu0 0
  %130 = vmatprep.subr.bf16.mxu0 0
  %131 = vmatpush1.bf16.xpose.msra.mxu0 0
  %132 = vmatprep.subr.bf16.mxu0 0
  %133 = vmatpush1.bf16.xpose.msra.mxu0 0
  %134 = vmatprep.subr.bf16.mxu0 0
  %135 = vmatpush1.bf16.xpose.msra.mxu0 0
  %136 = vmatprep.mubr.bf16.mxu0 0
  %137 = vmatmul.mubr.bf16.gmra.mrb[0].mxu0 %v99
  %v138 = vpop.f32.mrb[0].mxu0
  %v139 = vadd.f32 0.0, %v138
  %v140 = vpop.f32.mrb[0].mxu0
  %v141 = vpop.f32.mrb[0].mxu0
  %v142 = vadd.f32 0.0, %v141
  %v143 = vpop.f32.mrb[0].mxu0
  %144 = vdwg.mxu0
  %v145 = vmul.f32 %v139, 0.25
  %v146 = vmul.f32 %v142, 0.25
  %v147 = vadd.f32 %v145, %v21
  %v148 = vadd.f32 %v146, %v22
  %v149 = vsel %vm97, %v147, -inf
  %150 = vmax.xlane.f32.xlu0 %v149
  %v151 = vpop.xlane.xlu0 %150
  %v152 = vsel %vm97, %v148, -inf
  %153 = vmax.xlane.f32.xlu0 %v152
  %v154 = vpop.xlane.xlu0 %153
  %v155 = vsub.f32 %v147, %v151
  %v156 = vsub.f32 %v148, %v154
  %v157 = vmul.f32 %v155, 1.442695
  %v158 = vpow.pop %v157
  %v159 = vmul.f32 %v156, 1.442695
  %v160 = vpow.pop %v159
  %v161 = vsel %vm97, %v158, 0.0
  %162 = vadd.xlane.f32.xlu0 %v161
  %v163 = vpop.xlane.xlu0 %162
  %v164 = vsel %vm97, %v160, 0.0
  %165 = vadd.xlane.f32.xlu0 %v164
  %v166 = vpop.xlane.xlu0 %165
  %v167 = vrcp.pop %v163
  %v168 = vrcp.pop %v166
  %v169 = vmul.f32 %v158, %v167
  %v170 = vmul.f32 %v160, %v168
  %v171 = vpack.c.bf16 %v170, %v169
  %172 = vrot.lane.b32.xlu0 %v93, 64
  %v173 = vpop.permute.xlu0 %172
  %v176 = vsel %vm97, %v171, 0
  %178 = vmatprep.subr.bf16.mxu0 0
  %179 = vmatpush1.bf16.msra.mxu0 %v173
  %180 = vmatprep.subr.bf16.mxu0 0
  %181 = vmatpush1.bf16.msra.mxu0 0
  %182 = vmatprep.subr.bf16.mxu0 0
  %183 = vmatpush1.bf16.msra.mxu0 0
  %184 = vmatprep.subr.bf16.mxu0 0
  %185 = vmatpush1.bf16.msra.mxu0 0
  %186 = vmatprep.subr.bf16.mxu0 0
  %187 = vmatpush1.bf16.msra.mxu0 0
  %188 = vmatprep.subr.bf16.mxu0 0
  %189 = vmatpush1.bf16.msra.mxu0 0
  %190 = vmatprep.subr.bf16.mxu0 0
  %191 = vmatpush1.bf16.msra.mxu0 0
  %192 = vmatprep.subr.bf16.mxu0 0
  %193 = vmatpush1.bf16.msra.mxu0 0
  %194 = vmatprep.subr.bf16.mxu0 0
  %195 = vmatpush1.bf16.msra.mxu0 0
  %196 = vmatprep.subr.bf16.mxu0 0
  %197 = vmatpush1.bf16.msra.mxu0 0
  %198 = vmatprep.subr.bf16.mxu0 0
  %199 = vmatpush1.bf16.msra.mxu0 0
  %200 = vmatprep.subr.bf16.mxu0 0
  %201 = vmatpush1.bf16.msra.mxu0 0
  %202 = vmatprep.subr.bf16.mxu0 0
  %203 = vmatpush1.bf16.msra.mxu0 0
  %204 = vmatprep.subr.bf16.mxu0 0
  %205 = vmatpush1.bf16.msra.mxu0 0
  %206 = vmatprep.subr.bf16.mxu0 0
  %207 = vmatpush1.bf16.msra.mxu0 0
  %208 = vmatprep.subr.bf16.mxu0 0
  %209 = vmatpush1.bf16.msra.mxu0 0
  %210 = vmatprep.mubr.bf16.mxu0 0
  %211 = vmatmul.mubr.bf16.gmra.mrb[0].mxu0 %v176
  %v212 = vpop.f32.mrb[0].mxu0
  %v213 = vadd.f32 0.0, %v212
  %v214 = vpop.f32.mrb[0].mxu0
  %v215 = vpop.f32.mrb[0].mxu0
  %v216 = vadd.f32 0.0, %v215
  %v217 = vpop.f32.mrb[0].mxu0
  %218 = vdwg.mxu0
  %219 = vrot.lane.b32.xlu0 %v93, 112
  %v220 = vpop.permute.xlu0 %219
  %221 = vrot.lane.b32.xlu0 %v93, 80
  %v222 = vpop.permute.xlu0 %221
  %v224 = vsel %vm97, %v220, 0
  %v227 = vsel %vm97, %v222, 0
  %229 = vmatprep.subr.bf16.mxu0 0
  %230 = vmatpush1.bf16.xpose.msra.mxu0 %v227
  %231 = vmatprep.subr.bf16.mxu0 0
  %232 = vmatpush1.bf16.xpose.msra.mxu0 0
  %233 = vmatprep.subr.bf16.mxu0 0
  %234 = vmatpush1.bf16.xpose.msra.mxu0 0
  %235 = vmatprep.subr.bf16.mxu0 0
  %236 = vmatpush1.bf16.xpose.msra.mxu0 0
  %237 = vmatprep.subr.bf16.mxu0 0
  %238 = vmatpush1.bf16.xpose.msra.mxu0 0
  %239 = vmatprep.subr.bf16.mxu0 0
  %240 = vmatpush1.bf16.xpose.msra.mxu0 0
  %241 = vmatprep.subr.bf16.mxu0 0
  %242 = vmatpush1.bf16.xpose.msra.mxu0 0
  %243 = vmatprep.subr.bf16.mxu0 0
  %244 = vmatpush1.bf16.xpose.msra.mxu0 0
  %245 = vmatprep.subr.bf16.mxu0 0
  %246 = vmatpush1.bf16.xpose.msra.mxu0 0
  %247 = vmatprep.subr.bf16.mxu0 0
  %248 = vmatpush1.bf16.xpose.msra.mxu0 0
  %249 = vmatprep.subr.bf16.mxu0 0
  %250 = vmatpush1.bf16.xpose.msra.mxu0 0
  %251 = vmatprep.subr.bf16.mxu0 0
  %252 = vmatpush1.bf16.xpose.msra.mxu0 0
  %253 = vmatprep.subr.bf16.mxu0 0
  %254 = vmatpush1.bf16.xpose.msra.mxu0 0
  %255 = vmatprep.subr.bf16.mxu0 0
  %256 = vmatpush1.bf16.xpose.msra.mxu0 0
  %257 = vmatprep.subr.bf16.mxu0 0
  %258 = vmatpush1.bf16.xpose.msra.mxu0 0
  %259 = vmatprep.subr.bf16.mxu0 0
  %260 = vmatpush1.bf16.xpose.msra.mxu0 0
  %261 = vmatprep.mubr.bf16.mxu0 0
  %262 = vmatmul.mubr.bf16.gmra.mrb[0].mxu0 %v224
  %v263 = vpop.f32.mrb[0].mxu0
  %v264 = vadd.f32 0.0, %v263
  %v265 = vpop.f32.mrb[0].mxu0
  %v266 = vpop.f32.mrb[0].mxu0
  %v267 = vadd.f32 0.0, %v266
  %v268 = vpop.f32.mrb[0].mxu0
  %269 = vdwg.mxu0
  %v270 = vmul.f32 %v264, 0.25
  %v271 = vmul.f32 %v267, 0.25
  %v272 = vadd.f32 %v270, %v21
  %v273 = vadd.f32 %v271, %v22
  %v274 = vsel %vm97, %v272, -inf
  %275 = vmax.xlane.f32.xlu0 %v274
  %v276 = vpop.xlane.xlu0 %275
  %v277 = vsel %vm97, %v273, -inf
  %278 = vmax.xlane.f32.xlu0 %v277
  %v279 = vpop.xlane.xlu0 %278
  %v280 = vsub.f32 %v272, %v276
  %v281 = vsub.f32 %v273, %v279
  %v282 = vmul.f32 %v280, 1.442695
  %v283 = vpow.pop %v282
  %v284 = vmul.f32 %v281, 1.442695
  %v285 = vpow.pop %v284
  %v286 = vsel %vm97, %v283, 0.0
  %287 = vadd.xlane.f32.xlu0 %v286
  %v288 = vpop.xlane.xlu0 %287
  %v289 = vsel %vm97, %v285, 0.0
  %290 = vadd.xlane.f32.xlu0 %v289
  %v291 = vpop.xlane.xlu0 %290
  %v292 = vrcp.pop %v288
  %v293 = vrcp.pop %v291
  %v294 = vmul.f32 %v283, %v292
  %v295 = vmul.f32 %v285, %v293
  %v296 = vpack.c.bf16 %v295, %v294
  %297 = vrot.lane.b32.xlu0 %v93, 48
  %v298 = vpop.permute.xlu0 %297
  %v301 = vsel %vm97, %v296, 0
  %303 = vmatprep.subr.bf16.mxu0 0
  %304 = vmatpush1.bf16.msra.mxu0 %v298
  %305 = vmatprep.subr.bf16.mxu0 0
  %306 = vmatpush1.bf16.msra.mxu0 0
  %307 = vmatprep.subr.bf16.mxu0 0
  %308 = vmatpush1.bf16.msra.mxu0 0
  %309 = vmatprep.subr.bf16.mxu0 0
  %310 = vmatpush1.bf16.msra.mxu0 0
  %311 = vmatprep.subr.bf16.mxu0 0
  %312 = vmatpush1.bf16.msra.mxu0 0
  %313 = vmatprep.subr.bf16.mxu0 0
  %314 = vmatpush1.bf16.msra.mxu0 0
  %315 = vmatprep.subr.bf16.mxu0 0
  %316 = vmatpush1.bf16.msra.mxu0 0
  %317 = vmatprep.subr.bf16.mxu0 0
  %318 = vmatpush1.bf16.msra.mxu0 0
  %319 = vmatprep.subr.bf16.mxu0 0
  %320 = vmatpush1.bf16.msra.mxu0 0
  %321 = vmatprep.subr.bf16.mxu0 0
  %322 = vmatpush1.bf16.msra.mxu0 0
  %323 = vmatprep.subr.bf16.mxu0 0
  %324 = vmatpush1.bf16.msra.mxu0 0
  %325 = vmatprep.subr.bf16.mxu0 0
  %326 = vmatpush1.bf16.msra.mxu0 0
  %327 = vmatprep.subr.bf16.mxu0 0
  %328 = vmatpush1.bf16.msra.mxu0 0
  %329 = vmatprep.subr.bf16.mxu0 0
  %330 = vmatpush1.bf16.msra.mxu0 0
  %331 = vmatprep.subr.bf16.mxu0 0
  %332 = vmatpush1.bf16.msra.mxu0 0
  %333 = vmatprep.subr.bf16.mxu0 0
  %334 = vmatpush1.bf16.msra.mxu0 0
  %335 = vmatprep.mubr.bf16.mxu0 0
  %336 = vmatmul.mubr.bf16.gmra.mrb[0].mxu0 %v301
  %v337 = vpop.f32.mrb[0].mxu0
  %v338 = vadd.f32 0.0, %v337
  %v339 = vpop.f32.mrb[0].mxu0
  %v340 = vpop.f32.mrb[0].mxu0
  %v341 = vadd.f32 0.0, %v340
  %v342 = vpop.f32.mrb[0].mxu0
  %343 = vdwg.mxu0
  %346 = vrot.lane.b32.xlu0 %v338, 16
  %v347 = vpop.permute.xlu0 %346
  %348 = vrot.lane.b32.xlu0 %v341, 16
  %v349 = vpop.permute.xlu0 %348
  %v352 = vsel %vm97, %v213, %v347
  %v353 = vsel %vm97, %v216, %v349
  %v354 = vpack.c.bf16 %v353, %v352
  %355 = vrot.lane.b32.xlu0 %v44, 32
  %v356 = vpop.permute.xlu0 %355
  %357 = vrot.lane.b32.xlu0 %v45, 32
  %v358 = vpop.permute.xlu0 %357
  %362 = vrot.lane.b32.xlu0 %v35, 32
  %v363 = vpop.permute.xlu0 %362
  %v366 = vsel %vm48, %v354, 0
  %368 = vmatprep.subr.bf16.mxu0 0
  %369 = vmatpush1.bf16.msra.mxu0 %v356
  %370 = vmatprep.subr.bf16.mxu0 0
  %371 = vmatpush1.bf16.msra.mxu0 %v358
  %372 = vmatprep.subr.bf16.mxu0 0
  %373 = vmatpush1.bf16.msra.mxu0 0
  %374 = vmatprep.subr.bf16.mxu0 0
  %375 = vmatpush1.bf16.msra.mxu0 0
  %376 = vmatprep.subr.bf16.mxu0 0
  %377 = vmatpush1.bf16.msra.mxu0 0
  %378 = vmatprep.subr.bf16.mxu0 0
  %379 = vmatpush1.bf16.msra.mxu0 0
  %380 = vmatprep.subr.bf16.mxu0 0
  %381 = vmatpush1.bf16.msra.mxu0 0
  %382 = vmatprep.subr.bf16.mxu0 0
  %383 = vmatpush1.bf16.msra.mxu0 0
  %384 = vmatprep.subr.bf16.mxu0 0
  %385 = vmatpush1.bf16.msra.mxu0 0
  %386 = vmatprep.subr.bf16.mxu0 0
  %387 = vmatpush1.bf16.msra.mxu0 0
  %388 = vmatprep.subr.bf16.mxu0 0
  %389 = vmatpush1.bf16.msra.mxu0 0
  %390 = vmatprep.subr.bf16.mxu0 0
  %391 = vmatpush1.bf16.msra.mxu0 0
  %392 = vmatprep.subr.bf16.mxu0 0
  %393 = vmatpush1.bf16.msra.mxu0 0
  %394 = vmatprep.subr.bf16.mxu0 0
  %395 = vmatpush1.bf16.msra.mxu0 0
  %396 = vmatprep.subr.bf16.mxu0 0
  %397 = vmatpush1.bf16.msra.mxu0 0
  %398 = vmatprep.subr.bf16.mxu0 0
  %399 = vmatpush1.bf16.msra.mxu0 0
  %400 = vmatprep.mubr.bf16.mxu0 0
  %401 = vmatmul.mubr.bf16.gmra.mrb[0].mxu0 %v366
  %v402 = vpop.f32.mrb[0].mxu0
  %v403 = vadd.f32 %v363, %v402
  %v404 = vpop.f32.mrb[0].mxu0
  %v405 = vpop.f32.mrb[0].mxu0
  %v406 = vadd.f32 %v363, %v405
  %v407 = vpop.f32.mrb[0].mxu0
  %408 = vdwg.mxu0
  %v409 = vadd.f32 %v18, %v403
  %v410 = vadd.f32 %v19, %v406
  %v411 = vsel %vm48, %v409, 0.0
  %412 = vadd.xlane.f32.xlu0 %v411
  %v413 = vpop.xlane.xlu0 %412
  %v414 = vsel %vm48, %v410, 0.0
  %415 = vadd.xlane.f32.xlu0 %v414
  %v416 = vpop.xlane.xlu0 %415
  %v417 = vrcp.pop 32.0
  %v418 = vmul.f32 %v413, %v417
  %v419 = vmul.f32 %v416, %v417
  %v420 = vsub.f32 %v409, %v418
  %v421 = vsub.f32 %v410, %v419
  %v422 = vmul.f32 %v420, %v420
  %v423 = vmul.f32 %v421, %v421
  %v424 = vsel %vm48, %v422, 0.0
  %425 = vadd.xlane.f32.xlu0 %v424
  %v426 = vpop.xlane.xlu0 %425
  %v427 = vsel %vm48, %v423, 0.0
  %428 = vadd.xlane.f32.xlu0 %v427
  %v429 = vpop.xlane.xlu0 %428
  %v430 = vmul.f32 %v426, %v417
  %v431 = vmul.f32 %v429, %v417
  %v432 = vadd.f32 %v430, 1e-12
  %v433 = vadd.f32 %v431, 1e-12
  %v434 = vrsqrt.pop %v432
  %v435 = vrsqrt.pop %v433
  %v436 = vmul.f32 %v420, %v434
  %v437 = vmul.f32 %v421, %v435
  %v438 = vlaneseq
  %v439 = vshrl.u32 %v438, 7
  %v440 = vsub.s32 0, %v439
  %v441 = vrot.slane %v25, %v440
  %443 = vrot.lane.b32.xlu0 %v441, 96
  %v444 = vpop.permute.xlu0 %443
  %v446 = vmul.f32 %v436, %v444
  %v447 = vmul.f32 %v437, %v444
  %448 = vrot.lane.b32.xlu0 %v441, 64
  %v449 = vpop.permute.xlu0 %448
  %v451 = vadd.f32 %v446, %v449
  %v452 = vadd.f32 %v447, %v449
  %v453 = vpack.c.bf16 %v452, %v451
  %v454 = vld [vmem:[%s2 + $0x4] sm:$0xf]
  %v455 = vld [vmem:[%s2 + $0x18] sm:$0xf]
  %v456 = vld [vmem:[%s2 + $0x2c] sm:$0xf]
  %v457 = vld [vmem:[%s2 + $0x40] sm:$0xf]
  %v458 = vlaneseq
  %v459 = vshrl.u32 %v458, 7
  %v460 = vsub.s32 0, %v459
  %v461 = vrot.slane %v24, %v460
  %v466 = vunpack.c.l.b16 %v454
  %v467 = vunpack.c.l.b16 %v455
  %v468 = vunpack.c.l.b16 %v456
  %v469 = vunpack.c.l.b16 %v457
  %v470 = vpack.c.b16 %v467, %v466
  %v471 = vpack.c.b16 %v469, %v468
  %v475 = vsel %vm48, %v453, 0
  %477 = vmatprep.subr.bf16.mxu0 0
  %478 = vmatpush1.bf16.msra.mxu0 %v470
  %479 = vmatprep.subr.bf16.mxu0 0
  %480 = vmatpush1.bf16.msra.mxu0 %v471
  %481 = vmatprep.subr.bf16.mxu0 0
  %482 = vmatpush1.bf16.msra.mxu0 0
  %483 = vmatprep.subr.bf16.mxu0 0
  %484 = vmatpush1.bf16.msra.mxu0 0
  %485 = vmatprep.subr.bf16.mxu0 0
  %486 = vmatpush1.bf16.msra.mxu0 0
  %487 = vmatprep.subr.bf16.mxu0 0
  %488 = vmatpush1.bf16.msra.mxu0 0
  %489 = vmatprep.subr.bf16.mxu0 0
  %490 = vmatpush1.bf16.msra.mxu0 0
  %491 = vmatprep.subr.bf16.mxu0 0
  %492 = vmatpush1.bf16.msra.mxu0 0
  %493 = vmatprep.subr.bf16.mxu0 0
  %494 = vmatpush1.bf16.msra.mxu0 0
  %495 = vmatprep.subr.bf16.mxu0 0
  %496 = vmatpush1.bf16.msra.mxu0 0
  %497 = vmatprep.subr.bf16.mxu0 0
  %498 = vmatpush1.bf16.msra.mxu0 0
  %499 = vmatprep.subr.bf16.mxu0 0
  %500 = vmatpush1.bf16.msra.mxu0 0
  %501 = vmatprep.subr.bf16.mxu0 0
  %502 = vmatpush1.bf16.msra.mxu0 0
  %503 = vmatprep.subr.bf16.mxu0 0
  %504 = vmatpush1.bf16.msra.mxu0 0
  %505 = vmatprep.subr.bf16.mxu0 0
  %506 = vmatpush1.bf16.msra.mxu0 0
  %507 = vmatprep.subr.bf16.mxu0 0
  %508 = vmatpush1.bf16.msra.mxu0 0
  %509 = vmatprep.mubr.bf16.mxu0 0
  %510 = vmatmul.mubr.bf16.gmra.mrb[0].mxu0 %v475
  %v511 = vpop.f32.mrb[0].mxu0
  %v512 = vadd.f32 %v461, %v511
  %v513 = vpop.f32.mrb[0].mxu0
  %v514 = vpop.f32.mrb[0].mxu0
  %v515 = vadd.f32 %v461, %v514
  %v516 = vpop.f32.mrb[0].mxu0
  %517 = vdwg.mxu0
  %v518 = vmul.f32 %v512, 0.5
  %v519 = vmul.f32 %v515, 0.5
  %v520 = vmul.f32 %v512, 0.044715
  %v521 = vmul.f32 %v515, 0.044715
  %v522 = vmul.f32 %v520, %v512
  %v523 = vmul.f32 %v521, %v515
  %v524 = vmul.f32 %v522, %v512
  %v525 = vmul.f32 %v523, %v515
  %v526 = vadd.f32 %v512, %v524
  %v527 = vadd.f32 %v515, %v525
  %v528 = vmul.f32 %v526, 0.7978846
  %v529 = vmul.f32 %v527, 0.7978846
  %v530 = vtanh.pop %v528
  %v531 = vtanh.pop %v529
  %v532 = vadd.f32 %v530, 1.0
  %v533 = vadd.f32 %v531, 1.0
  %v534 = vmul.f32 %v518, %v532
  %v535 = vmul.f32 %v519, %v533
  %v536 = vpack.c.bf16 %v535, %v534
  %v537 = vld [vmem:[%s2 + $0x8] sm:$0xf]
  %v538 = vld [vmem:[%s2 + $0x1c] sm:$0xf]
  %v539 = vld [vmem:[%s2 + $0x30] sm:$0xf]
  %v540 = vld [vmem:[%s2 + $0x44] sm:$0xf]
  %v545 = vunpack.c.l.b16 %v537
  %v546 = vunpack.c.l.b16 %v538
  %v547 = vunpack.c.l.b16 %v539
  %v548 = vunpack.c.l.b16 %v540
  %v549 = vpack.c.b16 %v546, %v545
  %v550 = vpack.c.b16 %v548, %v547
  %553 = vmatprep.subr.bf16.mxu0 0
  %554 = vmatpush1.bf16.xpose.msra.mxu0 %v549
  %555 = vmatprep.subr.bf16.mxu0 0
  %556 = vmatpush1.bf16.xpose.msra.mxu0 %v550
  %557 = vmatprep.subr.bf16.mxu0 0
  %558 = vmatpush1.bf16.xpose.msra.mxu0 0
  %559 = vmatprep.subr.bf16.mxu0 0
  %560 = vmatpush1.bf16.xpose.msra.mxu0 0
  %561 = vmatprep.subr.bf16.mxu0 0
  %562 = vmatpush1.bf16.xpose.msra.mxu0 0
  %563 = vmatprep.subr.bf16.mxu0 0
  %564 = vmatpush1.bf16.xpose.msra.mxu0 0
  %565 = vmatprep.subr.bf16.mxu0 0
  %566 = vmatpush1.bf16.xpose.msra.mxu0 0
  %567 = vmatprep.subr.bf16.mxu0 0
  %568 = vmatpush1.bf16.xpose.msra.mxu0 0
  %569 = vmatprep.subr.bf16.mxu0 0
  %570 = vmatpush1.bf16.xpose.msra.mxu0 0
  %571 = vmatprep.subr.bf16.mxu0 0
  %572 = vmatpush1.bf16.xpose.msra.mxu0 0
  %573 = vmatprep.subr.bf16.mxu0 0
  %574 = vmatpush1.bf16.xpose.msra.mxu0 0
  %575 = vmatprep.subr.bf16.mxu0 0
  %576 = vmatpush1.bf16.xpose.msra.mxu0 0
  %577 = vmatprep.subr.bf16.mxu0 0
  %578 = vmatpush1.bf16.xpose.msra.mxu0 0
  %579 = vmatprep.subr.bf16.mxu0 0
  %580 = vmatpush1.bf16.xpose.msra.mxu0 0
  %581 = vmatprep.subr.bf16.mxu0 0
  %582 = vmatpush1.bf16.xpose.msra.mxu0 0
  %583 = vmatprep.subr.bf16.mxu0 0
  %584 = vmatpush1.bf16.xpose.msra.mxu0 0
  %585 = vmatprep.mubr.bf16.mxu0 0
  %586 = vmatmul.mubr.bf16.gmra.mrb[0].mxu0 %v536
  %v587 = vpop.f32.mrb[0].mxu0
  %v588 = vadd.f32 %v441, %v587
  %v589 = vpop.f32.mrb[0].mxu0
  %v590 = vpop.f32.mrb[0].mxu0
  %v591 = vadd.f32 %v441, %v590
  %v592 = vpop.f32.mrb[0].mxu0
  %593 = vdwg.mxu0
  %v594 = vadd.f32 %v451, %v588
  %v595 = vadd.f32 %v452, %v591
  %v596 = vsel %vm48, %v594, 0.0
  %597 = vadd.xlane.f32.xlu0 %v596
  %v598 = vpop.xlane.xlu0 %597
  %v599 = vsel %vm48, %v595, 0.0
  %600 = vadd.xlane.f32.xlu0 %v599
  %v601 = vpop.xlane.xlu0 %600
  %v602 = vmul.f32 %v598, %v417
  %v603 = vmul.f32 %v601, %v417
  %v604 = vsub.f32 %v594, %v602
  %v605 = vsub.f32 %v595, %v603
  %v606 = vmul.f32 %v604, %v604
  %v607 = vmul.f32 %v605, %v605
  %v608 = vsel %vm48, %v606, 0.0
  %609 = vadd.xlane.f32.xlu0 %v608
  %v610 = vpop.xlane.xlu0 %609
  %v611 = vsel %vm48, %v607, 0.0
  %612 = vadd.xlane.f32.xlu0 %v611
  %v613 = vpop.xlane.xlu0 %612
  %v614 = vmul.f32 %v610, %v417
  %v615 = vmul.f32 %v613, %v417
  %v616 = vadd.f32 %v614, 1e-12
  %v617 = vadd.f32 %v615, 1e-12
  %v618 = vrsqrt.pop %v616
  %v619 = vrsqrt.pop %v617
  %v620 = vmul.f32 %v604, %v618
  %v621 = vmul.f32 %v605, %v619
  %622 = vrot.lane.b32.xlu0 %v441, 32
  %v623 = vpop.permute.xlu0 %622
  %v625 = vmul.f32 %v620, %v623
  %v626 = vmul.f32 %v621, %v623
  %v627 = vlaneseq
  %v628 = vshrl.u32 %v627, 7
  %v629 = vsub.s32 0, %v628
  %v630 = vrot.slane %v26, %v629
  %v631 = vadd.f32 %v625, %v630
  %v632 = vadd.f32 %v626, %v630
  %v633 = vpack.c.bf16 %v632, %v631
  %v634 = vld [vmem:[%s2 + $0xc] sm:$0xf]
  %v635 = vld [vmem:[%s2 + $0x20] sm:$0xf]
  %v636 = vld [vmem:[%s2 + $0x34] sm:$0xf]
  %v637 = vld [vmem:[%s2 + $0x48] sm:$0xf]
  %v642 = vunpack.c.l.b16 %v634
  %v643 = vunpack.c.l.b16 %v635
  %v644 = vunpack.c.l.b16 %v636
  %v645 = vunpack.c.l.b16 %v637
  %v646 = vpack.c.b16 %v643, %v642
  %v647 = vpack.c.b16 %v645, %v644
  %651 = vrot.lane.b32.xlu0 %v630, 96
  %v652 = vpop.permute.xlu0 %651
  %v655 = vsel %vm48, %v633, 0
  %657 = vmatprep.subr.bf16.mxu0 0
  %658 = vmatpush1.bf16.msra.mxu0 %v646
  %659 = vmatprep.subr.bf16.mxu0 0
  %660 = vmatpush1.bf16.msra.mxu0 %v647
  %661 = vmatprep.subr.bf16.mxu0 0
  %662 = vmatpush1.bf16.msra.mxu0 0
  %663 = vmatprep.subr.bf16.mxu0 0
  %664 = vmatpush1.bf16.msra.mxu0 0
  %665 = vmatprep.subr.bf16.mxu0 0
  %666 = vmatpush1.bf16.msra.mxu0 0
  %667 = vmatprep.subr.bf16.mxu0 0
  %668 = vmatpush1.bf16.msra.mxu0 0
  %669 = vmatprep.subr.bf16.mxu0 0
  %670 = vmatpush1.bf16.msra.mxu0 0
  %671 = vmatprep.subr.bf16.mxu0 0
  %672 = vmatpush1.bf16.msra.mxu0 0
  %673 = vmatprep.subr.bf16.mxu0 0
  %674 = vmatpush1.bf16.msra.mxu0 0
  %675 = vmatprep.subr.bf16.mxu0 0
  %676 = vmatpush1.bf16.msra.mxu0 0
  %677 = vmatprep.subr.bf16.mxu0 0
  %678 = vmatpush1.bf16.msra.mxu0 0
  %679 = vmatprep.subr.bf16.mxu0 0
  %680 = vmatpush1.bf16.msra.mxu0 0
  %681 = vmatprep.subr.bf16.mxu0 0
  %682 = vmatpush1.bf16.msra.mxu0 0
  %683 = vmatprep.subr.bf16.mxu0 0
  %684 = vmatpush1.bf16.msra.mxu0 0
  %685 = vmatprep.subr.bf16.mxu0 0
  %686 = vmatpush1.bf16.msra.mxu0 0
  %687 = vmatprep.subr.bf16.mxu0 0
  %688 = vmatpush1.bf16.msra.mxu0 0
  %689 = vmatprep.mubr.bf16.mxu0 0
  %690 = vmatmul.mubr.bf16.gmra.mrb[0].mxu0 %v655
  %v691 = vpop.f32.mrb[0].mxu0
  %v692 = vadd.f32 %v652, %v691
  %v693 = vpop.f32.mrb[0].mxu0
  %v694 = vpop.f32.mrb[0].mxu0
  %v695 = vadd.f32 %v652, %v694
  %v696 = vpop.f32.mrb[0].mxu0
  %697 = vdwg.mxu0
  %v698 = vtanh.pop %v692
  %v699 = vtanh.pop %v695
  %v700 = vpack.c.bf16 %v699, %v698
  %v701 = vld [vmem:[%s2 + $0xc] sm:$0xff]
  %v702 = vld [vmem:[%s2 + $0x20] sm:$0xff]
  %v703 = vld [vmem:[%s2 + $0x34] sm:$0xff]
  %v704 = vld [vmem:[%s2 + $0x48] sm:$0xff]
  %v705 = vlaneseq
  %v706 = vshrl.u32 %v705, 7
  %v707 = vsub.s32 0, %v706
  %v708 = vrot.slane %v27, %v707
  %v713 = vunpack.c.l.b16 %v701
  %v714 = vunpack.c.h.b16 %v701
  %v715 = vunpack.c.l.b16 %v702
  %v716 = vunpack.c.h.b16 %v702
  %v717 = vunpack.c.l.b16 %v703
  %v718 = vunpack.c.h.b16 %v703
  %v719 = vunpack.c.l.b16 %v704
  %v720 = vunpack.c.h.b16 %v704
  %v721 = vpack.c.b16 %v715, %v713
  %v722 = vpack.c.b16 %v716, %v714
  %v723 = vpack.c.b16 %v719, %v717
  %v724 = vpack.c.b16 %v720, %v718
  %725 = vrot.lane.b32.xlu0 %v721, 96
  %v726 = vpop.permute.xlu0 %725
  %727 = vrot.lane.b32.xlu0 %v722, 96
  %v728 = vpop.permute.xlu0 %727
  %729 = vrot.lane.b32.xlu0 %v723, 96
  %v730 = vpop.permute.xlu0 %729
  %731 = vrot.lane.b32.xlu0 %v724, 96
  %v732 = vpop.permute.xlu0 %731
  %vm733 = vcmask 785408
  %v734 = vsel %vm733, %v726, %v728
  %v735 = vsel %vm733, %v730, %v732
  %v739 = vsel %vm48, %v700, 0
  %741 = vmatprep.subr.bf16.mxu0 0
  %742 = vmatpush1.bf16.msra.mxu0 %v734
  %743 = vmatprep.subr.bf16.mxu0 0
  %744 = vmatpush1.bf16.msra.mxu0 %v735
  %745 = vmatprep.subr.bf16.mxu0 0
  %746 = vmatpush1.bf16.msra.mxu0 0
  %747 = vmatprep.subr.bf16.mxu0 0
  %748 = vmatpush1.bf16.msra.mxu0 0
  %749 = vmatprep.subr.bf16.mxu0 0
  %750 = vmatpush1.bf16.msra.mxu0 0
  %751 = vmatprep.subr.bf16.mxu0 0
  %752 = vmatpush1.bf16.msra.mxu0 0
  %753 = vmatprep.subr.bf16.mxu0 0
  %754 = vmatpush1.bf16.msra.mxu0 0
  %755 = vmatprep.subr.bf16.mxu0 0
  %756 = vmatpush1.bf16.msra.mxu0 0
  %757 = vmatprep.subr.bf16.mxu0 0
  %758 = vmatpush1.bf16.msra.mxu0 0
  %759 = vmatprep.subr.bf16.mxu0 0
  %760 = vmatpush1.bf16.msra.mxu0 0
  %761 = vmatprep.subr.bf16.mxu0 0
  %762 = vmatpush1.bf16.msra.mxu0 0
  %763 = vmatprep.subr.bf16.mxu0 0
  %764 = vmatpush1.bf16.msra.mxu0 0
  %765 = vmatprep.subr.bf16.mxu0 0
  %766 = vmatpush1.bf16.msra.mxu0 0
  %767 = vmatprep.subr.bf16.mxu0 0
  %768 = vmatpush1.bf16.msra.mxu0 0
  %769 = vmatprep.subr.bf16.mxu0 0
  %770 = vmatpush1.bf16.msra.mxu0 0
  %771 = vmatprep.subr.bf16.mxu0 0
  %772 = vmatpush1.bf16.msra.mxu0 0
  %773 = vmatprep.mubr.bf16.mxu0 0
  %774 = vmatmul.mubr.bf16.gmra.mrb[0].mxu0 %v739
  %v775 = vpop.f32.mrb[0].mxu0
  %v776 = vadd.f32 %v708, %v775
  %v777 = vpop.f32.mrb[0].mxu0
  %v778 = vpop.f32.mrb[0].mxu0
  %v779 = vadd.f32 %v708, %v778
  %v780 = vpop.f32.mrb[0].mxu0
  %781 = vdwg.mxu0
  %782 = vst [vmem:[%s4] sm:$0xff] %v776
  %783 = vst [vmem:[%s4 + $0x8] sm:$0xff] %v779
  // Predicated region
  $region18: #{bert_classifier_forward.1} parent=0 // pred_check
    _
  $region19: #{bert_classifier_forward.1} parent=0 // pred_check_branch
    %785 = sbr.rel (0) target = $region21
  $region20: #{bert_classifier_forward.1} parent=0 // pred_region
    _
  $region21: #{bert_classifier_forward.1} parent=0 // pred_fallthru
    _
  // Predicated region
  $region22: #{bert_classifier_forward.1} parent=0 // pred_check
    _
  $region23: #{bert_classifier_forward.1} parent=0 // pred_check_branch
    %787 = sbr.rel (0) target = $region25
  $region24: #{bert_classifier_forward.1} parent=0 // pred_region
    _
  $region25: #{bert_classifier_forward.1} parent=0 // pred_fallthru
    _

</llo_original>
